<compile_context>
chip_gen: v5e
topology: v5e:2x2
jax: 0.10.0
libtpu: 0.0.40
codegen_flags: <defaults>
</compile_context>

<pallas_src>
import functools

import jax
import jax.numpy as jnp
from jax import lax
from jax.experimental import pallas as pl
from jax.experimental.pallas import tpu as pltpu


def _cdiv(a, b):
    return -(-a // b)


def _round_up(x, m):
    return _cdiv(x, m) * m


def _triplet_loss_kernel(a_ref, p_ref, n_ref, o_ref, *scratch, margin, eps,
                         batch, feat, block_b, block_d, n_feat_tiles,
                         mask_rows, mask_cols):
    i = pl.program_id(0)            # batch-tile index   ("parallel")
    j = pl.program_id(1)            # feature-tile index ("arbitrary", reduction)

    # Stream inputs at native dtype; do all arithmetic in f32.
    a = a_ref[...].astype(jnp.float32)
    p = p_ref[...].astype(jnp.float32)
    n = n_ref[...].astype(jnp.float32)

    dp = a - p + eps
    dn = a - n + eps

    if mask_cols:   # static: only emitted when D was padded to block_d * n_feat_tiles
        col = j * block_d + lax.broadcasted_iota(jnp.int32, (block_b, block_d), 1)
        valid = col < feat
        dp = jnp.where(valid, dp, 0.0)
        dn = jnp.where(valid, dn, 0.0)

    pos_part = jnp.sum(dp * dp, axis=-1, keepdims=True)    # (block_b, 1)
    neg_part = jnp.sum(dn * dn, axis=-1, keepdims=True)    # (block_b, 1)

    def finalize(pos_sq, neg_sq):
        pos_d = jnp.sqrt(pos_sq)
        neg_d = jnp.sqrt(neg_sq)
        per_row = jnp.maximum(pos_d - neg_d + margin, 0.0)  # (block_b, 1)
        if mask_rows:  # static: only emitted when B was padded to block_b * nb
            row = i * block_b + lax.broadcasted_iota(jnp.int32, (block_b, 1), 0)
            per_row = jnp.where(row < batch, per_row, 0.0)
        tile_sum = jnp.sum(per_row)
        # Lane-dense (1, 8, 128) output tile (unmasked vst); wrapper reads [i,0,0].
        o_ref[...] = jnp.full(o_ref.shape, tile_sum, dtype=jnp.float32)

    if n_feat_tiles == 1:
        # Fast path: single feature tile, no scratch traffic at all.
        finalize(pos_part, neg_part)
    else:
        pos_ss, neg_ss = scratch

        @pl.when(j == 0)
        def _init():
            pos_ss[...] = jnp.zeros_like(pos_ss)
            neg_ss[...] = jnp.zeros_like(neg_ss)

        pos_ss[...] += pos_part
        neg_ss[...] += neg_part

        @pl.when(j == n_feat_tiles - 1)
        def _fin():
            finalize(pos_ss[...], neg_ss[...])


def triplet_loss(anchor, positive, negative, margin=1.0, eps=1e-6):
    """Pallas TPU implementation of TripletLoss.forward. Returns a scalar f32."""
    assert anchor.shape == positive.shape == negative.shape
    assert anchor.ndim == 2
    B, D = anchor.shape
    itemsize = jnp.dtype(anchor.dtype).itemsize

    # ---- Tile selection (mem-bound: large lane-dense blocks, bounded VMEM) ----
    LANE, SUBLANE = 128, 8
    PER_BLOCK_BYTES = 2 * 1024 * 1024   # ~2 MiB per input block (x3 inputs x2 bufs)
    TD_CAP = 2048                       # lanes per feature tile

    d128 = _round_up(D, LANE)
    if d128 <= TD_CAP:
        nd, td = 1, d128
    else:
        nd = _cdiv(d128, TD_CAP)
        td = _round_up(_cdiv(d128, nd), LANE)
    d_pad = nd * td

    max_tb = max(SUBLANE, (PER_BLOCK_BYTES // (td * itemsize)) // SUBLANE * SUBLANE)
    tb = int(min(_round_up(B, SUBLANE), max_tb, 1024))
    nb = _cdiv(B, tb)
    b_pad = nb * tb

    mask_rows = (b_pad != B)
    mask_cols = (d_pad != D)

    def maybe_pad(x):
        if b_pad == B and d_pad == D:
            return x
        return jnp.pad(x, ((0, b_pad - B), (0, d_pad - D)))

    a = maybe_pad(anchor)
    p = maybe_pad(positive)
    n = maybe_pad(negative)

    kernel = functools.partial(
        _triplet_loss_kernel,
        margin=float(margin), eps=float(eps),
        batch=B, feat=D, block_b=tb, block_d=td, n_feat_tiles=nd,
        mask_rows=mask_rows, mask_cols=mask_cols,
    )

    scratch_shapes = [] if nd == 1 else [
        pltpu.VMEM((tb, 1), jnp.float32),   # per-row sum((a-p+eps)^2)
        pltpu.VMEM((tb, 1), jnp.float32),   # per-row sum((a-n+eps)^2)
    ]

    in_spec = pl.BlockSpec((tb, td), lambda i, j: (i, j))
    partial_sums = pl.pallas_call(
        kernel,
        out_shape=jax.ShapeDtypeStruct((nb, 8, 128), jnp.float32),
        grid=(nb, nd),
        in_specs=[in_spec, in_spec, in_spec],
        out_specs=pl.BlockSpec((1, 8, 128), lambda i, j: (i, 0, 0)),
        scratch_shapes=scratch_shapes,
        compiler_params=pltpu.CompilerParams(
            dimension_semantics=("parallel", "arbitrary"),
            vmem_limit_bytes=32 * 1024 * 1024,
        ),
    )(a, p, n)

    # Tiny final reduction over nb per-tile partial sums, mean over GLOBAL B.
    return jnp.sum(partial_sums[:, 0, 0]) * (1.0 / B)


def _triplet_loss_ref(anchor, positive, negative, margin=1.0, eps=1e-6):
    a = anchor.astype(jnp.float32)
    p = positive.astype(jnp.float32)
    n = negative.astype(jnp.float32)
    pos_d = jnp.sqrt(jnp.sum((a - p + eps) ** 2, axis=-1))
    neg_d = jnp.sqrt(jnp.sum((a - n + eps) ** 2, axis=-1))
    return jnp.mean(jnp.maximum(pos_d - neg_d + margin, 0.0))


if __name__ == "__main__":
    keys = jax.random.split(jax.random.PRNGKey(0), 9)

    # Case 1: small f32 embeddings (module-consistent demo shape).
    B, D = 8, 32
    anchor = jax.random.normal(keys[0], (B, D), dtype=jnp.float32)
    positive = jax.random.normal(keys[1], (B, D), dtype=jnp.float32)
    negative = jax.random.normal(keys[2], (B, D), dtype=jnp.float32)
    loss = jax.block_until_ready(triplet_loss(anchor, positive, negative, margin=1.0))
    ref = _triplet_loss_ref(anchor, positive, negative, margin=1.0)
    assert jnp.allclose(loss, ref, rtol=1e-4, atol=1e-5), (loss, ref)

    # Case 2: ragged bf16 embeddings (exercises row/column masking + bf16 stream).
    B2, D2 = 20, 300
    a2 = jax.random.normal(keys[3], (B2, D2), dtype=jnp.float32).astype(jnp.bfloat16)
    p2 = jax.random.normal(keys[4], (B2, D2), dtype=jnp.float32).astype(jnp.bfloat16)
    n2 = jax.random.normal(keys[5], (B2, D2), dtype=jnp.float32).astype(jnp.bfloat16)
    loss2 = jax.block_until_ready(triplet_loss(a2, p2, n2, margin=0.5))
    ref2 = _triplet_loss_ref(a2, p2, n2, margin=0.5)
    assert jnp.allclose(loss2, ref2, rtol=1e-4, atol=1e-5), (loss2, ref2)

    # Case 3: large-D path (feature dimension tiled across the reduction axis).
    B3, D3 = 12, 2500
    a3 = jax.random.normal(keys[6], (B3, D3), dtype=jnp.float32)
    p3 = jax.random.normal(keys[7], (B3, D3), dtype=jnp.float32)
    n3 = jax.random.normal(keys[8], (B3, D3), dtype=jnp.float32)
    loss3 = jax.block_until_ready(triplet_loss(a3, p3, n3, margin=1.0))
    ref3 = _triplet_loss_ref(a3, p3, n3, margin=1.0)
    assert jnp.allclose(loss3, ref3, rtol=1e-4, atol=1e-5), (loss3, ref3)

    print("KERNEL_OK")
</pallas_src>

<mosaic_0001>
module attributes {stable_mosaic.version = 11 : i64} {
  func.func @_triplet_loss_kernel(%arg0: i32, %arg1: i32, %arg2: memref<8x128xf32, #tpu.memory_space<vmem>>, %arg3: memref<8x128xf32, #tpu.memory_space<vmem>>, %arg4: memref<8x128xf32, #tpu.memory_space<vmem>>, %arg5: memref<1x8x128xf32, #tpu.memory_space<vmem>>) attributes {dimension_semantics = [#tpu.dimension_semantics<parallel>, #tpu.dimension_semantics<arbitrary>], iteration_bounds = array<i64: 1, 1>, scalar_prefetch = 0 : i64, scratch_operands = 0 : i64, tpu.core_type = #tpu.core_type<tc>, window_params = [{transform_indices = @transform_0, window_bounds = array<i64: 8, 128>}, {transform_indices = @transform_1, window_bounds = array<i64: 8, 128>}, {transform_indices = @transform_2, window_bounds = array<i64: 8, 128>}, {transform_indices = @transform_3, window_bounds = array<i64: 1, 8, 128>}]} {
    %c0 = arith.constant 0 : index
    %c0_0 = arith.constant 0 : index
    %0 = vector.load %arg2[%c0, %c0_0] : memref<8x128xf32, #tpu.memory_space<vmem>>, vector<8x128xf32>
    %c0_1 = arith.constant 0 : index
    %c0_2 = arith.constant 0 : index
    %1 = vector.load %arg3[%c0_1, %c0_2] : memref<8x128xf32, #tpu.memory_space<vmem>>, vector<8x128xf32>
    %c0_3 = arith.constant 0 : index
    %c0_4 = arith.constant 0 : index
    %2 = vector.load %arg4[%c0_3, %c0_4] : memref<8x128xf32, #tpu.memory_space<vmem>>, vector<8x128xf32>
    %3 = arith.subf %0, %1 : vector<8x128xf32>
    %cst = arith.constant 9.99999997E-7 : f32
    %4 = vector.broadcast %cst : f32 to vector<8x128xf32>
    %5 = arith.addf %3, %4 : vector<8x128xf32>
    %6 = arith.subf %0, %2 : vector<8x128xf32>
    %cst_5 = arith.constant 9.99999997E-7 : f32
    %7 = vector.broadcast %cst_5 : f32 to vector<8x128xf32>
    %8 = arith.addf %6, %7 : vector<8x128xf32>
    %c128_i32 = arith.constant 128 : i32
    %9 = arith.muli %arg1, %c128_i32 : i32
    %10 = tpu.iota {dimensions = array<i32: 1>} : vector<8x128xi32>
    %11 = vector.broadcast %9 : i32 to vector<8x128xi32>
    %12 = arith.addi %11, %10 : vector<8x128xi32>
    %c32_i32 = arith.constant 32 : i32
    %13 = vector.broadcast %c32_i32 : i32 to vector<8x128xi32>
    %14 = arith.cmpi slt, %12, %13 : vector<8x128xi32>
    %cst_6 = arith.constant 0.000000e+00 : f32
    %15 = vector.broadcast %cst_6 : f32 to vector<8x128xf32>
    %16 = arith.select %14, %5, %15 : vector<8x128xi1>, vector<8x128xf32>
    %cst_7 = arith.constant 0.000000e+00 : f32
    %17 = vector.broadcast %cst_7 : f32 to vector<8x128xf32>
    %18 = arith.select %14, %8, %17 : vector<8x128xi1>, vector<8x128xf32>
    %19 = arith.mulf %16, %16 : vector<8x128xf32>
    %cst_8 = arith.constant dense<0.000000e+00> : vector<8xf32>
    %20 = vector.multi_reduction <add>, %19, %cst_8 [1] : vector<8x128xf32> to vector<8xf32>
    %21 = vector.shape_cast %20 : vector<8xf32> to vector<8x1xf32>
    %22 = arith.mulf %18, %18 : vector<8x128xf32>
    %cst_9 = arith.constant dense<0.000000e+00> : vector<8xf32>
    %23 = vector.multi_reduction <add>, %22, %cst_9 [1] : vector<8x128xf32> to vector<8xf32>
    %24 = vector.shape_cast %23 : vector<8xf32> to vector<8x1xf32>
    %25 = math.sqrt %21 : vector<8x1xf32>
    %26 = math.sqrt %24 : vector<8x1xf32>
    %27 = arith.subf %25, %26 : vector<8x1xf32>
    %cst_10 = arith.constant 1.000000e+00 : f32
    %28 = vector.broadcast %cst_10 : f32 to vector<8x1xf32>
    %29 = arith.addf %27, %28 : vector<8x1xf32>
    %cst_11 = arith.constant 0.000000e+00 : f32
    %30 = vector.broadcast %cst_11 : f32 to vector<8x1xf32>
    %31 = arith.maximumf %29, %30 : vector<8x1xf32>
    %32 = vector.shape_cast %31 : vector<8x1xf32> to vector<1x8x1xf32>
    %cst_12 = arith.constant dense<0.000000e+00> : vector<1xf32>
    %33 = vector.multi_reduction <add>, %32, %cst_12 [1, 2] : vector<1x8x1xf32> to vector<1xf32>
    %34 = vector.shape_cast %33 : vector<1xf32> to vector<1x1x1xf32>
    %35 = vector.extract %34[0, 0, 0] : f32 from vector<1x1x1xf32>
    %36 = vector.broadcast %35 : f32 to vector<1x8x128xf32>
    %c0_13 = arith.constant 0 : index
    %c0_14 = arith.constant 0 : index
    %c0_15 = arith.constant 0 : index
    %37 = vector.load %arg5[%c0_13, %c0_14, %c0_15] : memref<1x8x128xf32, #tpu.memory_space<vmem>>, vector<1x8x128xf32>
    tpu.vector_store %arg5[%c0_13, %c0_14, %c0_15], %36 {strides = array<i32>} : memref<1x8x128xf32, #tpu.memory_space<vmem>>, vector<1x8x128xf32>,
    return
  }
  func.func @transform_0(%arg0: i32, %arg1: i32) -> (i32, i32) {
    %c0_i32 = arith.constant 0 : i32
    return %arg0, %arg1 : i32, i32
  }
  func.func @transform_1(%arg0: i32, %arg1: i32) -> (i32, i32) {
    %c0_i32 = arith.constant 0 : i32
    return %arg0, %arg1 : i32, i32
  }
  func.func @transform_2(%arg0: i32, %arg1: i32) -> (i32, i32) {
    %c0_i32 = arith.constant 0 : i32
    return %arg0, %arg1 : i32, i32
  }
  func.func @transform_3(%arg0: i32, %arg1: i32) -> (i32, i32, i32) {
    %c0_i32 = arith.constant 0 : i32
    %c0_i32_0 = arith.constant 0 : i32
    %c0_i32_1 = arith.constant 0 : i32
    return %arg0, %c0_i32, %c0_i32_0 : i32, i32, i32
  }
}

</mosaic_0001>

<llo_original>
// kernel: tpu_custom_call.1
$region0: #{tpu_custom_call.1}
  #allocation0 [shape = 'u32[]', space=smem, size = 0x4, offset = 0x4, fixed_abs, tag = 'smem constant byte address 0x4 - core index']
  #allocation1 [shape = 'u32[72,128]{1,0:T(1,128)}', space=vmem, size = 0x9000, scoped, tag = 'internal scratch']
  %s0 = inlined_call_operand.hbm [shape: f32[8,128], index: 0, kind: input, shape index: {}]
  %s1 = inlined_call_operand.hbm [shape: f32[8,128], index: 1, kind: input, shape index: {}]
  %s2 = inlined_call_operand.hbm [shape: f32[8,128], index: 2, kind: input, shape index: {}]
  %s3 = inlined_call_operand.hbm [shape: f32[1,8,128], index: 3, kind: output, shape index: {}]
  %s4 = sld [smem:[#allocation0]]
  $region34: #{tpu_custom_call.1} parent=0
    _
  %s6 = ssub.s32 1, %s4
  %s7 = scalar_select 0, %s6, %s4
  $region1: #{tpu_custom_call.1} parent=0
    #allocation2 [shape = 'u8[4096]{0}', space=vmem, size = 0x1000, scoped, tag = 'input window, operand 0, single buffered']
    #allocation3 [shape = 's32[1]{0}', space=sflag, size = 0x4, scoped, tag = 'scoped memory for tpu_custom_call.1']
    #allocation4 [shape = 's32[1]{0}', space=sflag, size = 0x4, scoped, tag = 'scoped memory for tpu_custom_call.1']
    #allocation5 [shape = 'u8[4096]{0}', space=vmem, size = 0x1000, scoped, tag = 'input window, operand 1, single buffered']
    #allocation6 [shape = 's32[1]{0}', space=sflag, size = 0x4, scoped, tag = 'scoped memory for tpu_custom_call.1']
    #allocation7 [shape = 'u8[4096]{0}', space=vmem, size = 0x1000, scoped, tag = 'input window, operand 2, single buffered']
    #allocation8 [shape = 'u8[4096]{0}', space=vmem, size = 0x1000, scoped, tag = 'output window, operand 0, single buffered']
    %8 = vsyncpa [#allocation3], 0
    %9 = vsyncpa [#allocation6], 0
    %10 = vsyncpa [#allocation4], 0
    // Predicated region
    $region2: #{tpu_custom_call.1} parent=1 // pred_check
      _
    $region3: #{tpu_custom_call.1} parent=1 // pred_check_branch
      %12 = sbr.rel (0) target = $region5
    $region4: #{tpu_custom_call.1} parent=1 // pred_region
      %14 = vsyncadd [#allocation3], 0
      %s16 = sshll.u32 %s0, 4
      %s17 = int_to_ptr.hbm [resolvable:$true] %s16
      %s18 = sshll.u32 [#allocation2], 4
      %s19 = int_to_ptr.vmem [resolvable:$true] %s18
      %21 = dma.hbm_to_vmem [thread:$0]  %s17, 128, %s19, [#allocation3]
    $region5: #{tpu_custom_call.1} parent=1 // pred_fallthru
      _
    // Predicated region
    $region6: #{tpu_custom_call.1} parent=1 // pred_check
      _
    $region7: #{tpu_custom_call.1} parent=1 // pred_check_branch
      %23 = sbr.rel (0) target = $region9
    $region8: #{tpu_custom_call.1} parent=1 // pred_region
      %25 = vsyncadd [#allocation6], 0
      %s27 = sshll.u32 %s1, 4
      %s28 = int_to_ptr.hbm [resolvable:$true] %s27
      %s29 = sshll.u32 [#allocation5], 4
      %s30 = int_to_ptr.vmem [resolvable:$true] %s29
      %32 = dma.hbm_to_vmem [thread:$0]  %s28, 128, %s30, [#allocation6]
    $region9: #{tpu_custom_call.1} parent=1 // pred_fallthru
      _
    // Predicated region
    $region10: #{tpu_custom_call.1} parent=1 // pred_check
      _
    $region11: #{tpu_custom_call.1} parent=1 // pred_check_branch
      %34 = sbr.rel (0) target = $region13
    $region12: #{tpu_custom_call.1} parent=1 // pred_region
      %36 = vsyncadd [#allocation6], 0
      %s38 = sshll.u32 %s2, 4
      %s39 = int_to_ptr.hbm [resolvable:$true] %s38
      %s40 = sshll.u32 [#allocation7], 4
      %s41 = int_to_ptr.vmem [resolvable:$true] %s40
      %43 = dma.hbm_to_vmem [thread:$0]  %s39, 128, %s41, [#allocation6]
    $region13: #{tpu_custom_call.1} parent=1 // pred_fallthru
      _
    // Predicated region
    $region14: #{tpu_custom_call.1} parent=1 // pred_check
      _
    $region15: #{tpu_custom_call.1} parent=1 // pred_check_branch
      %45 = sbr.rel (0) target = $region17
    $region16: #{tpu_custom_call.1} parent=1 // pred_region
      %47 = dma.done [#allocation3], 128
    $region17: #{tpu_custom_call.1} parent=1 // pred_fallthru
      _
    // Predicated region
    $region18: #{tpu_custom_call.1} parent=1 // pred_check
      _
    $region19: #{tpu_custom_call.1} parent=1 // pred_check_branch
      %49 = sbr.rel (0) target = $region21
    $region20: #{tpu_custom_call.1} parent=1 // pred_region
      %51 = dma.done [#allocation6], 128
    $region21: #{tpu_custom_call.1} parent=1 // pred_fallthru
      _
    // Predicated region
    $region22: #{tpu_custom_call.1} parent=1 // pred_check
      _
    $region23: #{tpu_custom_call.1} parent=1 // pred_check_branch
      %53 = sbr.rel (0) target = $region25
    $region24: #{tpu_custom_call.1} parent=1 // pred_region
      %55 = dma.done [#allocation6], 128
    $region25: #{tpu_custom_call.1} parent=1 // pred_fallthru
      _
    %v56 = vld [vmem:[#allocation2] sm:$0xff]
    %v57 = vld [vmem:[#allocation5] sm:$0xff]
    %v58 = vld [vmem:[#allocation7] sm:$0xff]
    %v59 = vsub.f32 %v56, %v57
    %v60 = vadd.f32 %v59, 1e-06
    %v61 = vsub.f32 %v56, %v58
    %v62 = vadd.f32 %v61, 1e-06
    %s63 = smul.u32 0, 128
    %v64 = vlaneseq
    %v65 = vand.u32 %v64, 127
    %v66 = vstv %s63
    %v67 = vadd.s32 %v66, %v65
    %vm68 = vcmp.lt.s32.totalorder %v67, 32
    %v69 = vsel %vm68, %v60, 0.0
    %v70 = vsel %vm68, %v62, 0.0
    %v71 = vmul.f32 %v69, %v69
    %72 = vadd.xlane.f32.xlu0 %v71
    %v73 = vpop.xlane.xlu0 %72
    %v74 = vmul.f32 %v70, %v70
    %75 = vadd.xlane.f32.xlu0 %v74
    %v76 = vpop.xlane.xlu0 %75
    %v77 = vrsqrt.pop %v73
    %v78 = vmul.f32 %v77, %v73
    %v79 = vmul.f32 %v78, %v77
    %v80 = vmul.f32 0.5, %v79
    %v81 = vsub.f32 1.5, %v80
    %v82 = vmul.f32 %v77, %v81
    %v83 = vmul.f32 %v73, %v82
    %vm84 = vcmp.eq.f32.partialorder %v73, inf
    %v85 = vsel %vm84, %v73, %v83
    %vm86 = vcmp.eq.f32.partialorder %v73, 0.0
    %v87 = vand.u32 %v73, 2147483648
    %v88 = vsel %vm86, %v87, %v85
    %v89 = vrsqrt.pop %v76
    %v90 = vmul.f32 %v89, %v76
    %v91 = vmul.f32 %v90, %v89
    %v92 = vmul.f32 0.5, %v91
    %v93 = vsub.f32 1.5, %v92
    %v94 = vmul.f32 %v89, %v93
    %v95 = vmul.f32 %v76, %v94
    %vm96 = vcmp.eq.f32.partialorder %v76, inf
    %v97 = vsel %vm96, %v76, %v95
    %vm98 = vcmp.eq.f32.partialorder %v76, 0.0
    %v99 = vand.u32 %v76, 2147483648
    %v100 = vsel %vm98, %v99, %v97
    %v101 = vsub.f32 %v88, %v100
    %v102 = vadd.f32 %v101, 1.0
    %v103 = vmax.f32 %v102, 0.0
    %vm104 = vcmask 7168
    %v105 = vsel %vm104, %v103, 0.0
    %106 = vadd.xlane.f32.xlu0 %v105
    %v107 = vpop.xlane.xlu0 %106
    %v108 = vrot.slane %v107, 4
    %v109 = vadd.f32 %v107, %v108
    %v110 = vrot.slane %v109, 2
    %v111 = vadd.f32 %v109, %v110
    %v112 = vrot.slane %v111, 1
    %v113 = vadd.f32 %v111, %v112
    %s114 = vtos %v113
    %v115 = vstv %s114
    %116 = vst [vmem:[#allocation8] sm:$0xff] %v115
    // Predicated region
    $region26: #{tpu_custom_call.1} parent=1 // pred_check
      _
    $region27: #{tpu_custom_call.1} parent=1 // pred_check_branch
      %118 = sbr.rel (0) target = $region29
    $region28: #{tpu_custom_call.1} parent=1 // pred_region
      %120 = vsyncadd [#allocation4], 0
      %s122 = sshll.u32 [#allocation8], 4
      %s123 = int_to_ptr.vmem [resolvable:$true] %s122
      %s124 = sshll.u32 %s3, 4
      %s125 = int_to_ptr.hbm [resolvable:$true] %s124
      %127 = dma.vmem_to_hbm [thread:$0]  %s123, 128, %s125, [#allocation4]
    $region29: #{tpu_custom_call.1} parent=1 // pred_fallthru
      _
    // Predicated region
    $region30: #{tpu_custom_call.1} parent=1 // pred_check
      _
    $region31: #{tpu_custom_call.1} parent=1 // pred_check_branch
      %129 = sbr.rel (0) target = $region33
    $region32: #{tpu_custom_call.1} parent=1 // pred_region
      %131 = dma.done [#allocation4], 128
    $region33: #{tpu_custom_call.1} parent=1 // pred_fallthru
      _
    %132 = vsyncpa [#allocation3], 1
    %133 = vsyncpa [#allocation6], 1
    %134 = vsyncpa [#allocation4], 1

</llo_original>
